<compile_context>
chip_gen: v6e
topology: v6e:2x2x1
jax: 0.10.0
libtpu: 0.0.40
codegen_flags: <defaults>
</compile_context>

<pallas_src>
import functools

import jax
import jax.numpy as jnp
from jax.experimental import pallas as pl
from jax.experimental.pallas import tpu as pltpu

CLASSES = 18
EPSILON = 1e-07


def _round_up(x, m):
    return (x + m - 1) // m * m


def f1_loss_kernel(pred_ref, true_ref, out_ref, tp_acc, cs_acc, cnt_acc, *,
                   n_total):
    i = pl.program_id(0)

    @pl.when(i == 0)
    def _init():
        tp_acc[...] = jnp.zeros_like(tp_acc)
        cs_acc[...] = jnp.zeros_like(cs_acc)
        cnt_acc[...] = jnp.zeros_like(cnt_acc)

    p = pred_ref[...].astype(jnp.float32)          # (TN, C) logits (in-kernel cast)
    t = true_ref[...]                              # (TN, 1) int32 labels
    tn, c = p.shape

    # Mask rows past the real batch size (ragged last tile). Padded rows may
    # hold arbitrary bits, so neutralize the logits before exp as well.
    row = jax.lax.broadcasted_iota(jnp.int32, (tn, 1), 0)
    valid_b = (i * tn + row) < n_total             # (TN, 1) bool
    valid = valid_b.astype(jnp.float32)
    p = jnp.where(valid_b, p, 0.0)

    # Softmax along the class axis; divide goes to the EUP via vrcp.
    m = jnp.max(p, axis=1, keepdims=True)
    e = jnp.exp(p - m)
    denom = jnp.sum(e, axis=1, keepdims=True)
    sm = e * pl.reciprocal(denom, approx=True)     # (TN, C)
    sm = sm * valid                                # zero padded-row contributions

    # One-hot labels (masked); reused for both tp and per-class label count.
    col = jax.lax.broadcasted_iota(jnp.int32, (tn, c), 1)
    onehot = (col == t).astype(jnp.float32) * valid  # (TN, C)

    # Per-class sufficient statistics accumulated over the batch grid axis.
    tp_acc[...] += jnp.sum(onehot * sm, axis=0, keepdims=True)   # tp
    cs_acc[...] += jnp.sum(sm, axis=0, keepdims=True)            # colsum(softmax)
    cnt_acc[...] += jnp.sum(onehot, axis=0, keepdims=True)       # label counts

    @pl.when(i == pl.num_programs(0) - 1)
    def _finalize():
        tp = tp_acc[...]
        fp = cs_acc[...] - tp      # sum((1-onehot)*sm)  == colsum(sm) - tp
        fn = cnt_acc[...] - tp     # sum(onehot*(1-sm)) == class_count - tp
        precision = tp / (tp + fp + EPSILON)
        recall = tp / (tp + fn + EPSILON)
        f1 = 2.0 * (precision * recall) / (precision + recall + EPSILON)
        f1 = jnp.clip(f1, EPSILON, 1.0 - EPSILON)                 # (1, C)
        out_ref[...] = 1.0 - jnp.sum(f1, axis=1, keepdims=True) / jnp.float32(c)


def f1_loss(y_pred, y_true, classes=CLASSES, block_rows=1024):
    """y_pred: (N, classes) f32/bf16 logits; y_true: (N,) int — scalar loss."""
    assert y_pred.ndim == 2 and y_pred.shape[1] == classes
    assert y_true.ndim == 1 and y_true.shape[0] == y_pred.shape[0]
    n, c = y_pred.shape

    labels = y_true.astype(jnp.int32).reshape(n, 1)   # (N, 1) for lane bcast

    # Tile the batch. Each buffered pred tile costs TN*512 B (lane-padded to
    # 128 lanes, f32) x 2 for double buffering -> ~1 MiB at TN=1024: safe on
    # v5e / v6e / v7x VMEM budgets.
    tn = min(block_rows, _round_up(n, 8))
    num_tiles = pl.cdiv(n, tn)

    kernel = functools.partial(f1_loss_kernel, n_total=n)
    out = pl.pallas_call(
        kernel,
        out_shape=jax.ShapeDtypeStruct((1, 1), jnp.float32),
        grid_spec=pltpu.PrefetchScalarGridSpec(
            num_scalar_prefetch=0,
            grid=(num_tiles,),
            in_specs=[
                pl.BlockSpec((tn, c), lambda i: (i, 0)),
                pl.BlockSpec((tn, 1), lambda i: (i, 0)),
            ],
            out_specs=pl.BlockSpec((1, 1), lambda i: (0, 0)),
            scratch_shapes=[
                pltpu.VMEM((1, c), jnp.float32),   # tp accumulator
                pltpu.VMEM((1, c), jnp.float32),   # colsum(softmax) accumulator
                pltpu.VMEM((1, c), jnp.float32),   # label-count accumulator
            ],
        ),
        compiler_params=pltpu.CompilerParams(
            dimension_semantics=("arbitrary",)),
    )(y_pred, labels)
    return out[0, 0]


def f1_loss_ref(y_pred, y_true, classes=CLASSES, eps=EPSILON):
    """Pure-JAX reference mirroring the PyTorch forward pass."""
    y_true_oh = jax.nn.one_hot(y_true, classes, dtype=jnp.float32)
    y_pred = jax.nn.softmax(y_pred.astype(jnp.float32), axis=1)
    tp = (y_true_oh * y_pred).sum(axis=0)
    fp = ((1 - y_true_oh) * y_pred).sum(axis=0)
    fn = (y_true_oh * (1 - y_pred)).sum(axis=0)
    precision = tp / (tp + fp + eps)
    recall = tp / (tp + fn + eps)
    f1 = 2 * (precision * recall) / (precision + recall + eps)
    f1 = jnp.clip(f1, eps, 1 - eps)
    return 1 - f1.mean()


if __name__ == "__main__":
    key = jax.random.PRNGKey(0)
    k1, k2, k3, k4 = jax.random.split(key, 4)

    # Small single-tile case (f32 logits).
    n_small = 8
    yp_s = jax.random.normal(k1, (n_small, CLASSES), dtype=jnp.float32)
    yt_s = jax.random.randint(k2, (n_small,), 0, CLASSES, dtype=jnp.int32)
    loss_s = jax.block_until_ready(f1_loss(yp_s, yt_s))
    ref_s = jax.block_until_ready(f1_loss_ref(yp_s, yt_s))
    assert jnp.allclose(loss_s, ref_s, atol=1e-3, rtol=1e-3), (loss_s, ref_s)

    # Multi-tile case with a ragged last tile; bf16 logits cast in-kernel.
    n_big = 300
    yp_b = jax.random.normal(k3, (n_big, CLASSES), dtype=jnp.float32)
    yp_b_bf16 = yp_b.astype(jnp.bfloat16)
    yt_b = jax.random.randint(k4, (n_big,), 0, CLASSES, dtype=jnp.int32)
    loss_b = jax.block_until_ready(f1_loss(yp_b_bf16, yt_b, block_rows=128))
    ref_b = jax.block_until_ready(f1_loss_ref(yp_b_bf16.astype(jnp.float32), yt_b))
    assert jnp.allclose(loss_b, ref_b, atol=1e-3, rtol=1e-3), (loss_b, ref_b)

    print("KERNEL_OK")
</pallas_src>

<mosaic_0001>
module attributes {stable_mosaic.version = 11 : i64} {
  func.func @f1_loss_kernel(%arg0: i32, %arg1: memref<8x18xf32, #tpu.memory_space<vmem>>, %arg2: memref<8x1xi32, #tpu.memory_space<vmem>>, %arg3: memref<1x1xf32, #tpu.memory_space<vmem>>, %arg4: memref<1x18xf32, #tpu.memory_space<vmem>>, %arg5: memref<1x18xf32, #tpu.memory_space<vmem>>, %arg6: memref<1x18xf32, #tpu.memory_space<vmem>>) attributes {dimension_semantics = [#tpu.dimension_semantics<arbitrary>], iteration_bounds = array<i64: 1>, scalar_prefetch = 0 : i64, scratch_operands = 3 : i64, tpu.core_type = #tpu.core_type<tc>, window_params = [{transform_indices = @transform_0, window_bounds = array<i64: 8, 18>}, {transform_indices = @transform_1, window_bounds = array<i64: 8, 1>}, {pipeline_mode = #tpu.pipeline_mode<synchronous>, transform_indices = @transform_2, window_bounds = array<i64: 1, 1>}]} {
    %c0_i32 = arith.constant 0 : i32
    %0 = arith.cmpi eq, %arg0, %c0_i32 : i32
    %1 = arith.extui %0 : i1 to i32
    %c0_i32_0 = arith.constant 0 : i32
    %2 = arith.cmpi ne, %1, %c0_i32_0 : i32
    scf.if %2 {
      %cst_24 = arith.constant 0.000000e+00 : f32
      %55 = vector.broadcast %cst_24 : f32 to vector<1x18xf32>
      %c0_25 = arith.constant 0 : index
      %c0_26 = arith.constant 0 : index
      %56 = vector.load %arg4[%c0_25, %c0_26] : memref<1x18xf32, #tpu.memory_space<vmem>>, vector<1x18xf32>
      tpu.vector_store %arg4[%c0_25, %c0_26], %55 {strides = array<i32>} : memref<1x18xf32, #tpu.memory_space<vmem>>, vector<1x18xf32>,
      %cst_27 = arith.constant 0.000000e+00 : f32
      %57 = vector.broadcast %cst_27 : f32 to vector<1x18xf32>
      %c0_28 = arith.constant 0 : index
      %c0_29 = arith.constant 0 : index
      %58 = vector.load %arg5[%c0_28, %c0_29] : memref<1x18xf32, #tpu.memory_space<vmem>>, vector<1x18xf32>
      tpu.vector_store %arg5[%c0_28, %c0_29], %57 {strides = array<i32>} : memref<1x18xf32, #tpu.memory_space<vmem>>, vector<1x18xf32>,
      %cst_30 = arith.constant 0.000000e+00 : f32
      %59 = vector.broadcast %cst_30 : f32 to vector<1x18xf32>
      %c0_31 = arith.constant 0 : index
      %c0_32 = arith.constant 0 : index
      %60 = vector.load %arg6[%c0_31, %c0_32] : memref<1x18xf32, #tpu.memory_space<vmem>>, vector<1x18xf32>
      tpu.vector_store %arg6[%c0_31, %c0_32], %59 {strides = array<i32>} : memref<1x18xf32, #tpu.memory_space<vmem>>, vector<1x18xf32>,
    } else {
    }
    %c0 = arith.constant 0 : index
    %c0_1 = arith.constant 0 : index
    %3 = vector.load %arg1[%c0, %c0_1] : memref<8x18xf32, #tpu.memory_space<vmem>>, vector<8x18xf32>
    %c0_2 = arith.constant 0 : index
    %c0_3 = arith.constant 0 : index
    %4 = vector.load %arg2[%c0_2, %c0_3] : memref<8x1xi32, #tpu.memory_space<vmem>>, vector<8x1xi32>
    %5 = tpu.iota {dimensions = array<i32: 0>} : vector<8x1xi32>
    %c8_i32 = arith.constant 8 : i32
    %6 = arith.muli %arg0, %c8_i32 : i32
    %7 = vector.broadcast %6 : i32 to vector<8x1xi32>
    %8 = arith.addi %7, %5 : vector<8x1xi32>
    %c8_i32_4 = arith.constant 8 : i32
    %9 = vector.broadcast %c8_i32_4 : i32 to vector<8x1xi32>
    %10 = arith.cmpi slt, %8, %9 : vector<8x1xi32>
    %11 = arith.extui %10 : vector<8x1xi1> to vector<8x1xi32>
    %12 = arith.sitofp %11 : vector<8x1xi32> to vector<8x1xf32>
    %cst = arith.constant 0.000000e+00 : f32
    %13 = vector.shape_cast %10 : vector<8x1xi1> to vector<8x1xi1>
    %14 = vector.broadcast %13 : vector<8x1xi1> to vector<8x18xi1>
    %15 = vector.broadcast %cst : f32 to vector<8x18xf32>
    %16 = arith.select %14, %3, %15 : vector<8x18xi1>, vector<8x18xf32>
    %cst_5 = arith.constant dense<0xFF800000> : vector<8xf32>
    %17 = vector.multi_reduction <maximumf>, %16, %cst_5 [1] : vector<8x18xf32> to vector<8xf32>
    %18 = vector.shape_cast %17 : vector<8xf32> to vector<8x1xf32>
    %19 = vector.broadcast %18 : vector<8x1xf32> to vector<8x18xf32>
    %20 = arith.subf %16, %19 : vector<8x18xf32>
    %21 = math.exp %20 : vector<8x18xf32>
    %cst_6 = arith.constant dense<0.000000e+00> : vector<8xf32>
    %22 = vector.multi_reduction <add>, %21, %cst_6 [1] : vector<8x18xf32> to vector<8xf32>
    %23 = vector.shape_cast %22 : vector<8xf32> to vector<8x1xf32>
    %24 = tpu.reciprocal %23 {approx = true} : vector<8x1xf32> -> vector<8x1xf32>
    %25 = vector.broadcast %24 : vector<8x1xf32> to vector<8x18xf32>
    %26 = arith.mulf %21, %25 : vector<8x18xf32>
    %27 = vector.broadcast %12 : vector<8x1xf32> to vector<8x18xf32>
    %28 = arith.mulf %26, %27 : vector<8x18xf32>
    %29 = tpu.iota {dimensions = array<i32: 1>} : vector<8x18xi32>
    %30 = vector.broadcast %4 : vector<8x1xi32> to vector<8x18xi32>
    %31 = arith.cmpi eq, %29, %30 : vector<8x18xi32>
    %32 = arith.extui %31 : vector<8x18xi1> to vector<8x18xi32>
    %33 = arith.sitofp %32 : vector<8x18xi32> to vector<8x18xf32>
    %34 = vector.broadcast %12 : vector<8x1xf32> to vector<8x18xf32>
    %35 = arith.mulf %33, %34 : vector<8x18xf32>
    %c0_7 = arith.constant 0 : index
    %c0_8 = arith.constant 0 : index
    %36 = vector.load %arg4[%c0_7, %c0_8] : memref<1x18xf32, #tpu.memory_space<vmem>>, vector<1x18xf32>
    %37 = arith.mulf %35, %28 : vector<8x18xf32>
    %cst_9 = arith.constant dense<0.000000e+00> : vector<18xf32>
    %38 = vector.multi_reduction <add>, %37, %cst_9 [0] : vector<8x18xf32> to vector<18xf32>
    %39 = vector.shape_cast %38 : vector<18xf32> to vector<1x18xf32>
    %40 = arith.addf %36, %39 : vector<1x18xf32>
    %c0_10 = arith.constant 0 : index
    %c0_11 = arith.constant 0 : index
    %41 = vector.load %arg4[%c0_10, %c0_11] : memref<1x18xf32, #tpu.memory_space<vmem>>, vector<1x18xf32>
    tpu.vector_store %arg4[%c0_10, %c0_11], %40 {strides = array<i32>} : memref<1x18xf32, #tpu.memory_space<vmem>>, vector<1x18xf32>,
    %c0_12 = arith.constant 0 : index
    %c0_13 = arith.constant 0 : index
    %42 = vector.load %arg5[%c0_12, %c0_13] : memref<1x18xf32, #tpu.memory_space<vmem>>, vector<1x18xf32>
    %cst_14 = arith.constant dense<0.000000e+00> : vector<18xf32>
    %43 = vector.multi_reduction <add>, %28, %cst_14 [0] : vector<8x18xf32> to vector<18xf32>
    %44 = vector.shape_cast %43 : vector<18xf32> to vector<1x18xf32>
    %45 = arith.addf %42, %44 : vector<1x18xf32>
    %c0_15 = arith.constant 0 : index
    %c0_16 = arith.constant 0 : index
    %46 = vector.load %arg5[%c0_15, %c0_16] : memref<1x18xf32, #tpu.memory_space<vmem>>, vector<1x18xf32>
    tpu.vector_store %arg5[%c0_15, %c0_16], %45 {strides = array<i32>} : memref<1x18xf32, #tpu.memory_space<vmem>>, vector<1x18xf32>,
    %c0_17 = arith.constant 0 : index
    %c0_18 = arith.constant 0 : index
    %47 = vector.load %arg6[%c0_17, %c0_18] : memref<1x18xf32, #tpu.memory_space<vmem>>, vector<1x18xf32>
    %cst_19 = arith.constant dense<0.000000e+00> : vector<18xf32>
    %48 = vector.multi_reduction <add>, %35, %cst_19 [0] : vector<8x18xf32> to vector<18xf32>
    %49 = vector.shape_cast %48 : vector<18xf32> to vector<1x18xf32>
    %50 = arith.addf %47, %49 : vector<1x18xf32>
    %c0_20 = arith.constant 0 : index
    %c0_21 = arith.constant 0 : index
    %51 = vector.load %arg6[%c0_20, %c0_21] : memref<1x18xf32, #tpu.memory_space<vmem>>, vector<1x18xf32>
    tpu.vector_store %arg6[%c0_20, %c0_21], %50 {strides = array<i32>} : memref<1x18xf32, #tpu.memory_space<vmem>>, vector<1x18xf32>,
    %c0_i32_22 = arith.constant 0 : i32
    %52 = arith.cmpi eq, %arg0, %c0_i32_22 : i32
    %53 = arith.extui %52 : i1 to i32
    %c0_i32_23 = arith.constant 0 : i32
    %54 = arith.cmpi ne, %53, %c0_i32_23 : i32
    scf.if %54 {
      %c0_24 = arith.constant 0 : index
      %c0_25 = arith.constant 0 : index
      %55 = vector.load %arg4[%c0_24, %c0_25] : memref<1x18xf32, #tpu.memory_space<vmem>>, vector<1x18xf32>
      %c0_26 = arith.constant 0 : index
      %c0_27 = arith.constant 0 : index
      %56 = vector.load %arg5[%c0_26, %c0_27] : memref<1x18xf32, #tpu.memory_space<vmem>>, vector<1x18xf32>
      %57 = arith.subf %56, %55 : vector<1x18xf32>
      %c0_28 = arith.constant 0 : index
      %c0_29 = arith.constant 0 : index
      %58 = vector.load %arg6[%c0_28, %c0_29] : memref<1x18xf32, #tpu.memory_space<vmem>>, vector<1x18xf32>
      %59 = arith.subf %58, %55 : vector<1x18xf32>
      %60 = arith.addf %55, %57 : vector<1x18xf32>
      %cst_30 = arith.constant 1.000000e-07 : f32
      %61 = vector.broadcast %cst_30 : f32 to vector<1x18xf32>
      %62 = arith.addf %60, %61 : vector<1x18xf32>
      %63 = arith.divf %55, %62 : vector<1x18xf32>
      %64 = arith.addf %55, %59 : vector<1x18xf32>
      %cst_31 = arith.constant 1.000000e-07 : f32
      %65 = vector.broadcast %cst_31 : f32 to vector<1x18xf32>
      %66 = arith.addf %64, %65 : vector<1x18xf32>
      %67 = arith.divf %55, %66 : vector<1x18xf32>
      %68 = arith.mulf %63, %67 : vector<1x18xf32>
      %cst_32 = arith.constant 2.000000e+00 : f32
      %69 = vector.broadcast %cst_32 : f32 to vector<1x18xf32>
      %70 = arith.mulf %69, %68 : vector<1x18xf32>
      %71 = arith.addf %63, %67 : vector<1x18xf32>
      %cst_33 = arith.constant 1.000000e-07 : f32
      %72 = vector.broadcast %cst_33 : f32 to vector<1x18xf32>
      %73 = arith.addf %71, %72 : vector<1x18xf32>
      %74 = arith.divf %70, %73 : vector<1x18xf32>
      %cst_34 = arith.constant 1.000000e-07 : f32
      %cst_35 = arith.constant 0.99999988 : f32
      %75 = vector.broadcast %cst_34 : f32 to vector<1x18xf32>
      %76 = arith.maximumf %75, %74 : vector<1x18xf32>
      %77 = vector.broadcast %cst_35 : f32 to vector<1x18xf32>
      %78 = arith.minimumf %77, %76 : vector<1x18xf32>
      %cst_36 = arith.constant dense<0.000000e+00> : vector<1xf32>
      %79 = vector.multi_reduction <add>, %78, %cst_36 [1] : vector<1x18xf32> to vector<1xf32>
      %80 = vector.shape_cast %79 : vector<1xf32> to vector<1x1xf32>
      %cst_37 = arith.constant 1.800000e+01 : f32
      %81 = vector.broadcast %cst_37 : f32 to vector<1x1xf32>
      %82 = arith.divf %80, %81 : vector<1x1xf32>
      %cst_38 = arith.constant 1.000000e+00 : f32
      %83 = vector.broadcast %cst_38 : f32 to vector<1x1xf32>
      %84 = arith.subf %83, %82 : vector<1x1xf32>
      %c0_39 = arith.constant 0 : index
      %c0_40 = arith.constant 0 : index
      %85 = vector.load %arg3[%c0_39, %c0_40] : memref<1x1xf32, #tpu.memory_space<vmem>>, vector<1x1xf32>
      tpu.vector_store %arg3[%c0_39, %c0_40], %84 {strides = array<i32>} : memref<1x1xf32, #tpu.memory_space<vmem>>, vector<1x1xf32>,
    } else {
    }
    return
  }
  func.func @transform_0(%arg0: i32) -> (i32, i32) {
    %c0_i32 = arith.constant 0 : i32
    %c0_i32_0 = arith.constant 0 : i32
    return %arg0, %c0_i32 : i32, i32
  }
  func.func @transform_1(%arg0: i32) -> (i32, i32) {
    %c0_i32 = arith.constant 0 : i32
    %c0_i32_0 = arith.constant 0 : i32
    return %arg0, %c0_i32 : i32, i32
  }
  func.func @transform_2(%arg0: i32) -> (i32, i32) {
    %c0_i32 = arith.constant 0 : i32
    %c0_i32_0 = arith.constant 0 : i32
    %c0_i32_1 = arith.constant 0 : i32
    return %c0_i32, %c0_i32_0 : i32, i32
  }
}

</mosaic_0001>

<llo_original>
// kernel: tpu_custom_call.1
$region0: #{tpu_custom_call.1}
  #allocation0 [shape = 'u32[]', space=smem, size = 0x4, offset = 0x4, fixed_abs, tag = 'smem constant byte address 0x4 - core index']
  #allocation1 [shape = 'u32[144,128]{1,0:T(1,128)}', space=vmem, size = 0x12000, scoped, tag = 'internal scratch']
  #allocation2 [shape = 'f32[1,18]{1,0:T(1,128)}', space=vmem, size = 0x200, scoped, tag = 'scratch operand']
  #allocation3 [shape = 'f32[1,18]{1,0:T(1,128)}', space=vmem, size = 0x200, scoped, tag = 'scratch operand']
  #allocation4 [shape = 'f32[1,18]{1,0:T(1,128)}', space=vmem, size = 0x200, scoped, tag = 'scratch operand']
  %s0 = inlined_call_operand.vmem [shape: f32[8,18], index: 0, kind: input, shape index: {}]
  %s1 = inlined_call_operand.vmem [shape: s32[8,1], index: 1, kind: input, shape index: {}]
  %s2 = inlined_call_operand.hbm [shape: f32[1,1], index: 2, kind: output, shape index: {}]
  %s3 = sld [smem:[#allocation0]]
  $region26: #{tpu_custom_call.1} parent=0
    _
  %s5 = ssub.s32 1, %s3
  %s6 = scalar_select 0, %s5, %s3
  $region1: #{tpu_custom_call.1} parent=0
    #allocation5 [shape = 'u8[512]{0}', space=vmem, size = 0x400, scoped, tag = 'output window, operand 0, single buffered']
    #allocation6 [shape = 's32[1]{0}', space=sflag, size = 0x4, scoped, tag = 'scoped memory for tpu_custom_call.1']
    %7 = vsyncpa [#allocation6], 0
    // Predicated region
    $region2: #{tpu_custom_call.1} parent=1 // pred_check
      _
    $region3: #{tpu_custom_call.1} parent=1 // pred_check_branch
      %9 = sbr.rel (0) target = $region5
    $region4: #{tpu_custom_call.1} parent=1 // pred_region
      _
    $region5: #{tpu_custom_call.1} parent=1 // pred_fallthru
      _
    // Predicated region
    $region6: #{tpu_custom_call.1} parent=1 // pred_check
      _
    $region7: #{tpu_custom_call.1} parent=1 // pred_check_branch
      %11 = sbr.rel (0) target = $region9
    $region8: #{tpu_custom_call.1} parent=1 // pred_region
      _
    $region9: #{tpu_custom_call.1} parent=1 // pred_fallthru
      _
    %p12 = scmp.eq.s32.totalorder 0, 0
    // Predicated region
    $region10: #{tpu_custom_call.1} parent=1 // pred_check
      %p13 = pneg %p12
    $region11: #{tpu_custom_call.1} parent=1 // pred_check_branch
      %15 = sbr.rel (%p13) target = $region13
    $region12: #{tpu_custom_call.1} parent=1 // pred_region
      %vm16 = vcmask 139264
      %17 = vst.msk [vmem:[#allocation2] sm:$0x1] %vm16, 0.0
      %18 = vst.msk [vmem:[#allocation3] sm:$0x1] %vm16, 0.0
      %19 = vst.msk [vmem:[#allocation4] sm:$0x1] %vm16, 0.0
    $region13: #{tpu_custom_call.1} parent=1 // pred_fallthru
      _
    %v20 = vld [vmem:[%s0] sm:$0xff]
    %v21 = vld [vmem:[%s1] sm:$0xff]
    %v22 = vlaneseq
    %v23 = vshrl.u32 %v22, 7
    %s24 = smul.u32 0, 8
    %v25 = vstv %s24
    %v26 = vadd.s32 %v25, %v23
    %vm27 = vcmp.lt.s32.totalorder %v26, 8
    %v28 = vsel %vm27, 1, 0
    %v29 = vcvt.s32.f32 %v28
    %vm30 = vcmp.eq.s32.totalorder %v28, 1
    %v31 = vsel %vm30, %v20, 0.0
    %vm32 = vcmask 146432
    %v33 = vsel %vm32, %v31, -inf
    %34 = vmax.xlane.f32.xlu0 %v33
    %v35 = vpop.xlane.xlu0 %34
    %v36 = vsub.f32 %v31, %v35
    %v37 = vmul.f32 %v36, 1.442695
    %v38 = vpow.pop %v37
    %v39 = vsel %vm32, %v38, 0.0
    %40 = vadd.xlane.f32.xlu0 %v39
    %v41 = vpop.xlane.xlu0 %40
    %v42 = vrcp.pop %v41
    %v43 = vmul.f32 %v38, %v42
    %v44 = vmul.f32 %v43, %v29
    %v45 = vlaneseq
    %v46 = vand.u32 %v45, 127
    %47 = vset.pattern.permute.xlu0 0
    %48 = vperm.xlu0 %47, %v21
    %v49 = vpop.permute.xlu0 %48
    %vm50 = vcmp.eq.s32.totalorder %v46, %v49
    %v51 = vsel %vm50, 1, 0
    %v52 = vcvt.s32.f32 %v51
    %v53 = vmul.f32 %v52, %v29
    %v54 = vld [vmem:[#allocation2] sm:$0x1]
    %v55 = vmul.f32 %v53, %v44
    %v56 = vsel %vm32, %v55, 0.0
    %v57 = vrot.slane %v56, 4
    %v58 = vadd.f32 %v56, %v57
    %v59 = vrot.slane %v58, 2
    %v60 = vadd.f32 %v58, %v59
    %v61 = vrot.slane %v60, 1
    %v62 = vadd.f32 %v60, %v61
    %v63 = vadd.f32 %v54, %v62
    %vm64 = vcmask 139264
    %65 = vst.msk [vmem:[#allocation2] sm:$0x1] %vm64, %v63
    %v66 = vld [vmem:[#allocation3] sm:$0x1]
    %v67 = vsel %vm32, %v44, 0.0
    %v68 = vrot.slane %v67, 4
    %v69 = vadd.f32 %v67, %v68
    %v70 = vrot.slane %v69, 2
    %v71 = vadd.f32 %v69, %v70
    %v72 = vrot.slane %v71, 1
    %v73 = vadd.f32 %v71, %v72
    %v74 = vadd.f32 %v66, %v73
    %75 = vst.msk [vmem:[#allocation3] sm:$0x1] %vm64, %v74
    %v76 = vld [vmem:[#allocation4] sm:$0x1]
    %v77 = vsel %vm32, %v53, 0.0
    %v78 = vrot.slane %v77, 4
    %v79 = vadd.f32 %v77, %v78
    %v80 = vrot.slane %v79, 2
    %v81 = vadd.f32 %v79, %v80
    %v82 = vrot.slane %v81, 1
    %v83 = vadd.f32 %v81, %v82
    %v84 = vadd.f32 %v76, %v83
    %85 = vst.msk [vmem:[#allocation4] sm:$0x1] %vm64, %v84
    // Predicated region
    $region14: #{tpu_custom_call.1} parent=1 // pred_check
      %p86 = pneg %p12
    $region15: #{tpu_custom_call.1} parent=1 // pred_check_branch
      %88 = sbr.rel (%p86) target = $region17
    $region16: #{tpu_custom_call.1} parent=1 // pred_region
      %v89 = vld [vmem:[#allocation2] sm:$0x1]
      %v90 = vld [vmem:[#allocation3] sm:$0x1]
      %v91 = vsub.f32 %v90, %v89
      %v92 = vld [vmem:[#allocation4] sm:$0x1]
      %v93 = vsub.f32 %v92, %v89
      %v94 = vadd.f32 %v89, %v91
      %v95 = vadd.f32 %v94, 1e-07
      %v96 = vrcp.pop %v95
      %v97 = vmul.f32 %v89, %v96
      %v98 = vadd.f32 %v89, %v93
      %v99 = vadd.f32 %v98, 1e-07
      %v100 = vrcp.pop %v99
      %v101 = vmul.f32 %v89, %v100
      %v102 = vmul.f32 %v97, %v101
      %v103 = vmul.f32 %v102, 2.0
      %v104 = vadd.f32 %v97, %v101
      %v105 = vadd.f32 %v104, 1e-07
      %v106 = vrcp.pop %v105
      %v107 = vmul.f32 %v103, %v106
      %v108 = vmax.f32 %v107, 1e-07
      %v109 = vmin.f32 %v108, 0.9999999
      %v110 = vsel %vm64, %v109, 0.0
      %111 = vadd.xlane.f32.xlu0 %v110
      %v112 = vpop.xlane.xlu0 %111
      %v113 = vrcp.pop 18.0
      %v114 = vmul.f32 %v112, %v113
      %v115 = vsub.f32 1.0, %v114
      %vm116 = vcmask 0
      %117 = vst.msk [vmem:[#allocation5] sm:$0x1] %vm116, %v115
    $region17: #{tpu_custom_call.1} parent=1 // pred_fallthru
      _
    // Predicated region
    $region18: #{tpu_custom_call.1} parent=1 // pred_check
      _
    $region19: #{tpu_custom_call.1} parent=1 // pred_check_branch
      %119 = sbr.rel (0) target = $region21
    $region20: #{tpu_custom_call.1} parent=1 // pred_region
      %s121 = ssub.s32 16, 16
      %122 = vsyncadd [#allocation6], %s121
      %s124 = sshll.u32 [#allocation5], 4
      %s125 = int_to_ptr.vmem [resolvable:$true] %s124
      %127 = dma.vmem_to_hbm [thread:$0]  %s125, 16, %s2, [#allocation6]
    $region21: #{tpu_custom_call.1} parent=1 // pred_fallthru
      _
    // Predicated region
    $region22: #{tpu_custom_call.1} parent=1 // pred_check
      _
    $region23: #{tpu_custom_call.1} parent=1 // pred_check_branch
      %129 = sbr.rel (0) target = $region25
    $region24: #{tpu_custom_call.1} parent=1 // pred_region
      %130 = dma.done [#allocation6], 16
    $region25: #{tpu_custom_call.1} parent=1 // pred_fallthru
      _
    %131 = vsyncpa [#allocation6], 1

</llo_original>
